<compile_context>
chip_gen: v7x
topology: tpu7x:2x2x1
jax: 0.10.0
libtpu: 0.0.40
codegen_flags: <defaults>
</compile_context>

<pallas_src>
import functools

import jax
import jax.numpy as jnp
from jax.experimental import pallas as pl
from jax.experimental.pallas import tpu as pltpu


def _round_up(x, m):
    return ((x + m - 1) // m) * m


def _mlp_kernel(x_ref, w1_ref, b1_ref, w2_ref, b2_ref, w3_ref, b3_ref,
                w4_ref, b4_ref, o_ref):
    # layer_1: Linear(in -> 300)
    h1 = jnp.dot(x_ref[...], w1_ref[...],
                 preferred_element_type=jnp.float32) + b1_ref[...]
    # layer_2: Linear(300 -> 200) + sigmoid  (exp + reciprocal -> EUP slot)
    h2 = jnp.dot(h1.astype(jnp.bfloat16), w2_ref[...],
                 preferred_element_type=jnp.float32) + b2_ref[...]
    h2 = pl.reciprocal(1.0 + jnp.exp(-h2), approx=True)
    # layer_3: Linear(200 -> 300) + relu
    h3 = jnp.dot(h2.astype(jnp.bfloat16), w3_ref[...],
                 preferred_element_type=jnp.float32) + b3_ref[...]
    h3 = jnp.maximum(h3, 0.0)
    # output_layer: Linear(300 -> out)
    o_ref[...] = jnp.dot(h3.astype(jnp.bfloat16), w4_ref[...],
                         preferred_element_type=jnp.float32) + b4_ref[...]


def _pad2d(a, rows, cols, dtype):
    """Zero-pad a 2-D array to (rows, cols) and cast to dtype."""
    out = jnp.zeros((rows, cols), dtype)
    return out.at[:a.shape[0], :a.shape[1]].set(a.astype(dtype))


def _streamed_spec(tile_rows, cols):
    return pl.BlockSpec((tile_rows, cols), lambda i: (i, 0))


def _resident_spec(shape):
    # Weights/biases: one full-array block, same for every grid step
    # (stays VMEM-resident across batch tiles).
    ndim = len(shape)
    return pl.BlockSpec(shape, lambda i, nd=ndim: (0,) * nd)


@functools.partial(jax.jit, static_argnames=("tile_b",))
def mlp_forward(x, params, *, tile_b=256):
    """x: [B, input_dim] float32. params: dict name -> (W[in,out], b[out])."""
    (w1, b1), (w2, b2), (w3, b3), (w4, b4) = (
        params["layer_1"], params["layer_2"], params["layer_3"],
        params["output_layer"])

    B, d_in = x.shape
    d_out = w4.shape[1]

    # Lane-aligned padded dims.
    din_p = _round_up(d_in, 128)
    h1_p, h2_p = 384, 256          # 300 -> 384, 200 -> 256
    dout_p = _round_up(d_out, 128)

    # Batch tiling: at least a full sublane, at most `tile_b` rows per step.
    tb = min(tile_b, _round_up(B, 8))
    b_p = _round_up(B, tb)

    # Zero-pad + cast. Matmul operands bf16, biases f32 (added post-matmul).
    xp = _pad2d(x, b_p, din_p, jnp.bfloat16)
    w1p = _pad2d(w1, din_p, h1_p, jnp.bfloat16)
    w2p = _pad2d(w2, h1_p, h2_p, jnp.bfloat16)
    w3p = _pad2d(w3, h2_p, h1_p, jnp.bfloat16)
    w4p = _pad2d(w4, h1_p, dout_p, jnp.bfloat16)
    b1p = _pad2d(b1.reshape(1, -1), 1, h1_p, jnp.float32)
    b2p = _pad2d(b2.reshape(1, -1), 1, h2_p, jnp.float32)
    b3p = _pad2d(b3.reshape(1, -1), 1, h1_p, jnp.float32)
    b4p = _pad2d(b4.reshape(1, -1), 1, dout_p, jnp.float32)

    args = (xp, w1p, b1p, w2p, b2p, w3p, b3p, w4p, b4p)

    in_specs = [_streamed_spec(tb, din_p)]
    in_specs += [_resident_spec(a.shape) for a in args[1:]]
    out_spec = _streamed_spec(tb, dout_p)

    out_p = pl.pallas_call(
        _mlp_kernel,
        out_shape=jax.ShapeDtypeStruct((b_p, dout_p), jnp.float32),
        grid=(b_p // tb,),
        in_specs=in_specs,
        out_specs=out_spec,
        compiler_params=pltpu.CompilerParams(
            dimension_semantics=("parallel",)),
    )(*args)

    # Strip batch/lane padding.
    return out_p[:B, :d_out]


def init_params(key, input_dim, output_dim):
    """Deterministic init mimicking torch.nn.Linear default U[-1/sqrt(fan_in), +]."""
    dims = [(input_dim, 300), (300, 200), (200, 300), (300, output_dim)]
    names = ["layer_1", "layer_2", "layer_3", "output_layer"]
    params = {}
    for name, (fan_in, fan_out) in zip(names, dims):
        key, kw, kb = jax.random.split(key, 3)
        bound = 1.0 / jnp.sqrt(fan_in)
        # Stored as [in, out] so the kernel computes x @ W.
        w = jax.random.uniform(kw, (fan_in, fan_out), jnp.float32, -bound, bound)
        b = jax.random.uniform(kb, (fan_out,), jnp.float32, -bound, bound)
        params[name] = (w, b)
    return params


def reference_forward(x, params):
    (w1, b1), (w2, b2), (w3, b3), (w4, b4) = (
        params["layer_1"], params["layer_2"], params["layer_3"],
        params["output_layer"])
    h1 = x @ w1 + b1
    h2 = jax.nn.sigmoid(h1 @ w2 + b2)
    h3 = jax.nn.relu(h2 @ w3 + b3)
    return h3 @ w4 + b4


if __name__ == "__main__":
    key = jax.random.PRNGKey(0)
    batch, input_dim, output_dim = 2, 32, 8

    kx, kp = jax.random.split(key)
    x = jax.random.normal(kx, (batch, input_dim), jnp.float32)
    params = init_params(kp, input_dim, output_dim)

    out = mlp_forward(x, params)
    out = jax.block_until_ready(out)

    ref = reference_forward(x, params)
    assert out.shape == (batch, output_dim)
    # bf16 matmul operands + approx reciprocal -> compare with bf16-level tolerance.
    assert jnp.allclose(out, ref, atol=5e-2, rtol=5e-2), "mismatch vs reference"
    print("KERNEL_OK")
</pallas_src>

<mosaic_0001>
module attributes {stable_mosaic.version = 11 : i64} {
  func.func @_mlp_kernel(%arg0: i32, %arg1: memref<8x128xbf16, #tpu.memory_space<vmem>>, %arg2: memref<128x384xbf16, #tpu.memory_space<vmem>>, %arg3: memref<1x384xf32, #tpu.memory_space<vmem>>, %arg4: memref<384x256xbf16, #tpu.memory_space<vmem>>, %arg5: memref<1x256xf32, #tpu.memory_space<vmem>>, %arg6: memref<256x384xbf16, #tpu.memory_space<vmem>>, %arg7: memref<1x384xf32, #tpu.memory_space<vmem>>, %arg8: memref<384x128xbf16, #tpu.memory_space<vmem>>, %arg9: memref<1x128xf32, #tpu.memory_space<vmem>>, %arg10: memref<8x128xf32, #tpu.memory_space<vmem>>) attributes {dimension_semantics = [#tpu.dimension_semantics<parallel>], iteration_bounds = array<i64: 1>, scalar_prefetch = 0 : i64, scratch_operands = 0 : i64, tpu.core_type = #tpu.core_type<tc>, window_params = [{transform_indices = @transform_0, window_bounds = array<i64: 8, 128>}, {pipeline_mode = #tpu.pipeline_mode<synchronous>, transform_indices = @transform_1, window_bounds = array<i64: 128, 384>}, {pipeline_mode = #tpu.pipeline_mode<synchronous>, transform_indices = @transform_2, window_bounds = array<i64: 1, 384>}, {pipeline_mode = #tpu.pipeline_mode<synchronous>, transform_indices = @transform_3, window_bounds = array<i64: 384, 256>}, {pipeline_mode = #tpu.pipeline_mode<synchronous>, transform_indices = @transform_4, window_bounds = array<i64: 1, 256>}, {pipeline_mode = #tpu.pipeline_mode<synchronous>, transform_indices = @transform_5, window_bounds = array<i64: 256, 384>}, {pipeline_mode = #tpu.pipeline_mode<synchronous>, transform_indices = @transform_6, window_bounds = array<i64: 1, 384>}, {pipeline_mode = #tpu.pipeline_mode<synchronous>, transform_indices = @transform_7, window_bounds = array<i64: 384, 128>}, {pipeline_mode = #tpu.pipeline_mode<synchronous>, transform_indices = @transform_8, window_bounds = array<i64: 1, 128>}, {transform_indices = @transform_9, window_bounds = array<i64: 8, 128>}]} {
    %c0 = arith.constant 0 : index
    %c0_0 = arith.constant 0 : index
    %0 = vector.load %arg1[%c0, %c0_0] : memref<8x128xbf16, #tpu.memory_space<vmem>>, vector<8x128xbf16>
    %c0_1 = arith.constant 0 : index
    %c0_2 = arith.constant 0 : index
    %1 = vector.load %arg2[%c0_1, %c0_2] : memref<128x384xbf16, #tpu.memory_space<vmem>>, vector<128x384xbf16>
    %cst = arith.constant dense<0.000000e+00> : vector<8x384xf32>
    %2 = tpu.matmul %0, %1, %cst {dimension_numbers = #tpu.dot_dimension_numbers<[1], [0], [0], [1], [0, 0, 1, 1], [], []>} : vector<8x128xbf16>, vector<128x384xbf16>, vector<8x384xf32> -> vector<8x384xf32>
    %c0_3 = arith.constant 0 : index
    %c0_4 = arith.constant 0 : index
    %3 = vector.load %arg3[%c0_3, %c0_4] : memref<1x384xf32, #tpu.memory_space<vmem>>, vector<1x384xf32>
    %4 = vector.broadcast %3 : vector<1x384xf32> to vector<8x384xf32>
    %5 = arith.addf %2, %4 : vector<8x384xf32>
    %6 = arith.truncf %5 : vector<8x384xf32> to vector<8x384xbf16>
    %c0_5 = arith.constant 0 : index
    %c0_6 = arith.constant 0 : index
    %7 = vector.load %arg4[%c0_5, %c0_6] : memref<384x256xbf16, #tpu.memory_space<vmem>>, vector<384x256xbf16>
    %cst_7 = arith.constant dense<0.000000e+00> : vector<8x256xf32>
    %8 = tpu.matmul %6, %7, %cst_7 {dimension_numbers = #tpu.dot_dimension_numbers<[1], [0], [0], [1], [0, 0, 1, 1], [], []>} : vector<8x384xbf16>, vector<384x256xbf16>, vector<8x256xf32> -> vector<8x256xf32>
    %c0_8 = arith.constant 0 : index
    %c0_9 = arith.constant 0 : index
    %9 = vector.load %arg5[%c0_8, %c0_9] : memref<1x256xf32, #tpu.memory_space<vmem>>, vector<1x256xf32>
    %10 = vector.broadcast %9 : vector<1x256xf32> to vector<8x256xf32>
    %11 = arith.addf %8, %10 : vector<8x256xf32>
    %cst_10 = arith.constant 0.000000e+00 : f32
    %12 = vector.broadcast %cst_10 : f32 to vector<8x256xf32>
    %13 = arith.subf %12, %11 : vector<8x256xf32>
    %14 = math.exp %13 : vector<8x256xf32>
    %cst_11 = arith.constant 1.000000e+00 : f32
    %15 = vector.broadcast %cst_11 : f32 to vector<8x256xf32>
    %16 = arith.addf %15, %14 : vector<8x256xf32>
    %17 = tpu.reciprocal %16 {approx = true} : vector<8x256xf32> -> vector<8x256xf32>
    %18 = arith.truncf %17 : vector<8x256xf32> to vector<8x256xbf16>
    %c0_12 = arith.constant 0 : index
    %c0_13 = arith.constant 0 : index
    %19 = vector.load %arg6[%c0_12, %c0_13] : memref<256x384xbf16, #tpu.memory_space<vmem>>, vector<256x384xbf16>
    %cst_14 = arith.constant dense<0.000000e+00> : vector<8x384xf32>
    %20 = tpu.matmul %18, %19, %cst_14 {dimension_numbers = #tpu.dot_dimension_numbers<[1], [0], [0], [1], [0, 0, 1, 1], [], []>} : vector<8x256xbf16>, vector<256x384xbf16>, vector<8x384xf32> -> vector<8x384xf32>
    %c0_15 = arith.constant 0 : index
    %c0_16 = arith.constant 0 : index
    %21 = vector.load %arg7[%c0_15, %c0_16] : memref<1x384xf32, #tpu.memory_space<vmem>>, vector<1x384xf32>
    %22 = vector.broadcast %21 : vector<1x384xf32> to vector<8x384xf32>
    %23 = arith.addf %20, %22 : vector<8x384xf32>
    %cst_17 = arith.constant 0.000000e+00 : f32
    %24 = vector.broadcast %cst_17 : f32 to vector<8x384xf32>
    %25 = arith.maximumf %23, %24 : vector<8x384xf32>
    %26 = arith.truncf %25 : vector<8x384xf32> to vector<8x384xbf16>
    %c0_18 = arith.constant 0 : index
    %c0_19 = arith.constant 0 : index
    %27 = vector.load %arg8[%c0_18, %c0_19] : memref<384x128xbf16, #tpu.memory_space<vmem>>, vector<384x128xbf16>
    %cst_20 = arith.constant dense<0.000000e+00> : vector<8x128xf32>
    %28 = tpu.matmul %26, %27, %cst_20 {dimension_numbers = #tpu.dot_dimension_numbers<[1], [0], [0], [1], [0, 0, 1, 1], [], []>} : vector<8x384xbf16>, vector<384x128xbf16>, vector<8x128xf32> -> vector<8x128xf32>
    %c0_21 = arith.constant 0 : index
    %c0_22 = arith.constant 0 : index
    %29 = vector.load %arg9[%c0_21, %c0_22] : memref<1x128xf32, #tpu.memory_space<vmem>>, vector<1x128xf32>
    %30 = vector.broadcast %29 : vector<1x128xf32> to vector<8x128xf32>
    %31 = arith.addf %28, %30 : vector<8x128xf32>
    %c0_23 = arith.constant 0 : index
    %c0_24 = arith.constant 0 : index
    %32 = vector.load %arg10[%c0_23, %c0_24] : memref<8x128xf32, #tpu.memory_space<vmem>>, vector<8x128xf32>
    tpu.vector_store %arg10[%c0_23, %c0_24], %31 {strides = array<i32>} : memref<8x128xf32, #tpu.memory_space<vmem>>, vector<8x128xf32>,
    return
  }
  func.func @transform_0(%arg0: i32) -> (i32, i32) {
    %c0_i32 = arith.constant 0 : i32
    %c0_i32_0 = arith.constant 0 : i32
    return %arg0, %c0_i32 : i32, i32
  }
  func.func @transform_1(%arg0: i32) -> (i32, i32) {
    %c0_i32 = arith.constant 0 : i32
    %c0_i32_0 = arith.constant 0 : i32
    %c0_i32_1 = arith.constant 0 : i32
    return %c0_i32, %c0_i32_0 : i32, i32
  }
  func.func @transform_2(%arg0: i32) -> (i32, i32) {
    %c0_i32 = arith.constant 0 : i32
    %c0_i32_0 = arith.constant 0 : i32
    %c0_i32_1 = arith.constant 0 : i32
    return %c0_i32, %c0_i32_0 : i32, i32
  }
  func.func @transform_3(%arg0: i32) -> (i32, i32) {
    %c0_i32 = arith.constant 0 : i32
    %c0_i32_0 = arith.constant 0 : i32
    %c0_i32_1 = arith.constant 0 : i32
    return %c0_i32, %c0_i32_0 : i32, i32
  }
  func.func @transform_4(%arg0: i32) -> (i32, i32) {
    %c0_i32 = arith.constant 0 : i32
    %c0_i32_0 = arith.constant 0 : i32
    %c0_i32_1 = arith.constant 0 : i32
    return %c0_i32, %c0_i32_0 : i32, i32
  }
  func.func @transform_5(%arg0: i32) -> (i32, i32) {
    %c0_i32 = arith.constant 0 : i32
    %c0_i32_0 = arith.constant 0 : i32
    %c0_i32_1 = arith.constant 0 : i32
    return %c0_i32, %c0_i32_0 : i32, i32
  }
  func.func @transform_6(%arg0: i32) -> (i32, i32) {
    %c0_i32 = arith.constant 0 : i32
    %c0_i32_0 = arith.constant 0 : i32
    %c0_i32_1 = arith.constant 0 : i32
    return %c0_i32, %c0_i32_0 : i32, i32
  }
  func.func @transform_7(%arg0: i32) -> (i32, i32) {
    %c0_i32 = arith.constant 0 : i32
    %c0_i32_0 = arith.constant 0 : i32
    %c0_i32_1 = arith.constant 0 : i32
    return %c0_i32, %c0_i32_0 : i32, i32
  }
  func.func @transform_8(%arg0: i32) -> (i32, i32) {
    %c0_i32 = arith.constant 0 : i32
    %c0_i32_0 = arith.constant 0 : i32
    %c0_i32_1 = arith.constant 0 : i32
    return %c0_i32, %c0_i32_0 : i32, i32
  }
  func.func @transform_9(%arg0: i32) -> (i32, i32) {
    %c0_i32 = arith.constant 0 : i32
    %c0_i32_0 = arith.constant 0 : i32
    return %arg0, %c0_i32 : i32, i32
  }
}

</mosaic_0001>

<llo_original>
// kernel: mlp_forward.1
$region0: #{mlp_forward.1}
  #allocation0 [shape = 'u32[]', space=smem, size = 0x4, offset = 0x4, fixed_abs, tag = 'smem constant byte address 0x4 - core index']
  #allocation1 [shape = 'u32[144,128]{1,0:T(1,128)}', space=vmem, size = 0x12000, scoped, tag = 'internal scratch']
  %s0 = inlined_call_operand.vmem [shape: bf16[8,128], index: 0, kind: input, shape index: {}]
  %s1 = inlined_call_operand.vmem [shape: bf16[128,384], index: 1, kind: input, shape index: {}]
  %s2 = inlined_call_operand.vmem [shape: f32[1,384], index: 2, kind: input, shape index: {}]
  %s3 = inlined_call_operand.vmem [shape: bf16[384,256], index: 3, kind: input, shape index: {}]
  %s4 = inlined_call_operand.vmem [shape: f32[1,256], index: 4, kind: input, shape index: {}]
  %s5 = inlined_call_operand.vmem [shape: bf16[256,384], index: 5, kind: input, shape index: {}]
  %s6 = inlined_call_operand.vmem [shape: f32[1,384], index: 6, kind: input, shape index: {}]
  %s7 = inlined_call_operand.vmem [shape: bf16[384,128], index: 7, kind: input, shape index: {}]
  %s8 = inlined_call_operand.vmem [shape: f32[1,128], index: 8, kind: input, shape index: {}]
  %s9 = inlined_call_operand.vmem [shape: f32[8,128], index: 9, kind: output, shape index: {}]
  %s10 = sld [smem:[#allocation0]]
  $region46: #{mlp_forward.1} parent=0
    _
  %s12 = ssub.s32 1, %s10
  %s13 = scalar_select 0, %s12, %s10
  // Predicated region
  $region2: #{mlp_forward.1} parent=0 // pred_check
    _
  $region3: #{mlp_forward.1} parent=0 // pred_check_branch
    %15 = sbr.rel (0) target = $region5
  $region4: #{mlp_forward.1} parent=0 // pred_region
    _
  $region5: #{mlp_forward.1} parent=0 // pred_fallthru
    _
  // Predicated region
  $region6: #{mlp_forward.1} parent=0 // pred_check
    _
  $region7: #{mlp_forward.1} parent=0 // pred_check_branch
    %17 = sbr.rel (0) target = $region9
  $region8: #{mlp_forward.1} parent=0 // pred_region
    _
  $region9: #{mlp_forward.1} parent=0 // pred_fallthru
    _
  // Predicated region
  $region10: #{mlp_forward.1} parent=0 // pred_check
    _
  $region11: #{mlp_forward.1} parent=0 // pred_check_branch
    %19 = sbr.rel (0) target = $region13
  $region12: #{mlp_forward.1} parent=0 // pred_region
    _
  $region13: #{mlp_forward.1} parent=0 // pred_fallthru
    _
  // Predicated region
  $region14: #{mlp_forward.1} parent=0 // pred_check
    _
  $region15: #{mlp_forward.1} parent=0 // pred_check_branch
    %21 = sbr.rel (0) target = $region17
  $region16: #{mlp_forward.1} parent=0 // pred_region
    _
  $region17: #{mlp_forward.1} parent=0 // pred_fallthru
    _
  // Predicated region
  $region18: #{mlp_forward.1} parent=0 // pred_check
    _
  $region19: #{mlp_forward.1} parent=0 // pred_check_branch
    %23 = sbr.rel (0) target = $region21
  $region20: #{mlp_forward.1} parent=0 // pred_region
    _
  $region21: #{mlp_forward.1} parent=0 // pred_fallthru
    _
  // Predicated region
  $region22: #{mlp_forward.1} parent=0 // pred_check
    _
  $region23: #{mlp_forward.1} parent=0 // pred_check_branch
    %25 = sbr.rel (0) target = $region25
  $region24: #{mlp_forward.1} parent=0 // pred_region
    _
  $region25: #{mlp_forward.1} parent=0 // pred_fallthru
    _
  // Predicated region
  $region26: #{mlp_forward.1} parent=0 // pred_check
    _
  $region27: #{mlp_forward.1} parent=0 // pred_check_branch
    %27 = sbr.rel (0) target = $region29
  $region28: #{mlp_forward.1} parent=0 // pred_region
    _
  $region29: #{mlp_forward.1} parent=0 // pred_fallthru
    _
  // Predicated region
  $region30: #{mlp_forward.1} parent=0 // pred_check
    _
  $region31: #{mlp_forward.1} parent=0 // pred_check_branch
    %29 = sbr.rel (0) target = $region33
  $region32: #{mlp_forward.1} parent=0 // pred_region
    _
  $region33: #{mlp_forward.1} parent=0 // pred_fallthru
    _
  // Predicated region
  $region34: #{mlp_forward.1} parent=0 // pred_check
    _
  $region35: #{mlp_forward.1} parent=0 // pred_check_branch
    %31 = sbr.rel (0) target = $region37
  $region36: #{mlp_forward.1} parent=0 // pred_region
    _
  $region37: #{mlp_forward.1} parent=0 // pred_fallthru
    _
  %v33 = vld [vmem:[%s0] sm:$0xf]
  %v34 = vld [vmem:[%s1] sm:$0xff]
  %v35 = vld [vmem:[%s1 + $0x8] sm:$0xf]
  %v36 = vld [vmem:[%s1 + $0xc] sm:$0xff]
  %v37 = vld [vmem:[%s1 + $0x14] sm:$0xf]
  %v38 = vld [vmem:[%s1 + $0x18] sm:$0xff]
  %v39 = vld [vmem:[%s1 + $0x20] sm:$0xf]
  %v40 = vld [vmem:[%s1 + $0x24] sm:$0xff]
  %v41 = vld [vmem:[%s1 + $0x2c] sm:$0xf]
  %v42 = vld [vmem:[%s1 + $0x30] sm:$0xff]
  %v43 = vld [vmem:[%s1 + $0x38] sm:$0xf]
  %v44 = vld [vmem:[%s1 + $0x3c] sm:$0xff]
  %v45 = vld [vmem:[%s1 + $0x44] sm:$0xf]
  %v46 = vld [vmem:[%s1 + $0x48] sm:$0xff]
  %v47 = vld [vmem:[%s1 + $0x50] sm:$0xf]
  %v48 = vld [vmem:[%s1 + $0x54] sm:$0xff]
  %v49 = vld [vmem:[%s1 + $0x5c] sm:$0xf]
  %v50 = vld [vmem:[%s1 + $0x60] sm:$0xff]
  %v51 = vld [vmem:[%s1 + $0x68] sm:$0xf]
  %v52 = vld [vmem:[%s1 + $0x6c] sm:$0xff]
  %v53 = vld [vmem:[%s1 + $0x74] sm:$0xf]
  %v54 = vld [vmem:[%s1 + $0x78] sm:$0xff]
  %v55 = vld [vmem:[%s1 + $0x80] sm:$0xf]
  %v56 = vld [vmem:[%s1 + $0x84] sm:$0xff]
  %v57 = vld [vmem:[%s1 + $0x8c] sm:$0xf]
  %v58 = vld [vmem:[%s1 + $0x90] sm:$0xff]
  %v59 = vld [vmem:[%s1 + $0x98] sm:$0xf]
  %v60 = vld [vmem:[%s1 + $0x9c] sm:$0xff]
  %v61 = vld [vmem:[%s1 + $0xa4] sm:$0xf]
  %v62 = vld [vmem:[%s1 + $0xa8] sm:$0xff]
  %v63 = vld [vmem:[%s1 + $0xb0] sm:$0xf]
  %v64 = vld [vmem:[%s1 + $0xb4] sm:$0xff]
  %v65 = vld [vmem:[%s1 + $0xbc] sm:$0xf]
  %v66 = vld [vmem:[%s2] sm:$0x7]
  %v68 = vlaneseq
  %v69 = vshrl.u32 %v68, 7
  %v70 = vsub.s32 0, %v69
  %v71 = vrot.slane %v66, %v70
  %v72 = vlaneseq
  %v73 = vshrl.u32 %v72, 7
  %v74 = vsub.s32 1, %v73
  %v75 = vrot.slane %v66, %v74
  %v76 = vlaneseq
  %v77 = vshrl.u32 %v76, 7
  %v78 = vsub.s32 2, %v77
  %v79 = vrot.slane %v66, %v78
  %v115 = vunpack.c.l.b16 %v34
  %v116 = vunpack.c.h.b16 %v34
  %v117 = vunpack.c.l.b16 %v35
  %v118 = vunpack.c.l.b16 %v36
  %v119 = vunpack.c.h.b16 %v36
  %v120 = vunpack.c.l.b16 %v37
  %v121 = vunpack.c.l.b16 %v38
  %v122 = vunpack.c.h.b16 %v38
  %v123 = vunpack.c.l.b16 %v39
  %v124 = vunpack.c.l.b16 %v40
  %v125 = vunpack.c.h.b16 %v40
  %v126 = vunpack.c.l.b16 %v41
  %v127 = vunpack.c.l.b16 %v42
  %v128 = vunpack.c.h.b16 %v42
  %v129 = vunpack.c.l.b16 %v43
  %v130 = vunpack.c.l.b16 %v44
  %v131 = vunpack.c.h.b16 %v44
  %v132 = vunpack.c.l.b16 %v45
  %v133 = vunpack.c.l.b16 %v46
  %v134 = vunpack.c.h.b16 %v46
  %v135 = vunpack.c.l.b16 %v47
  %v136 = vunpack.c.l.b16 %v48
  %v137 = vunpack.c.h.b16 %v48
  %v138 = vunpack.c.l.b16 %v49
  %v139 = vunpack.c.l.b16 %v50
  %v140 = vunpack.c.h.b16 %v50
  %v141 = vunpack.c.l.b16 %v51
  %v142 = vunpack.c.l.b16 %v52
  %v143 = vunpack.c.h.b16 %v52
  %v144 = vunpack.c.l.b16 %v53
  %v145 = vunpack.c.l.b16 %v54
  %v146 = vunpack.c.h.b16 %v54
  %v147 = vunpack.c.l.b16 %v55
  %v148 = vunpack.c.l.b16 %v56
  %v149 = vunpack.c.h.b16 %v56
  %v150 = vunpack.c.l.b16 %v57
  %v151 = vunpack.c.l.b16 %v58
  %v152 = vunpack.c.h.b16 %v58
  %v153 = vunpack.c.l.b16 %v59
  %v154 = vunpack.c.l.b16 %v60
  %v155 = vunpack.c.h.b16 %v60
  %v156 = vunpack.c.l.b16 %v61
  %v157 = vunpack.c.l.b16 %v62
  %v158 = vunpack.c.h.b16 %v62
  %v159 = vunpack.c.l.b16 %v63
  %v160 = vunpack.c.l.b16 %v64
  %v161 = vunpack.c.h.b16 %v64
  %v162 = vunpack.c.l.b16 %v65
  %v163 = vpack.c.b16 %v118, %v115
  %v164 = vpack.c.b16 %v119, %v116
  %v165 = vpack.c.b16 %v120, %v117
  %v166 = vpack.c.b16 %v124, %v121
  %v167 = vpack.c.b16 %v125, %v122
  %v168 = vpack.c.b16 %v126, %v123
  %v169 = vpack.c.b16 %v130, %v127
  %v170 = vpack.c.b16 %v131, %v128
  %v171 = vpack.c.b16 %v132, %v129
  %v172 = vpack.c.b16 %v136, %v133
  %v173 = vpack.c.b16 %v137, %v134
  %v174 = vpack.c.b16 %v138, %v135
  %v175 = vpack.c.b16 %v142, %v139
  %v176 = vpack.c.b16 %v143, %v140
  %v177 = vpack.c.b16 %v144, %v141
  %v178 = vpack.c.b16 %v148, %v145
  %v179 = vpack.c.b16 %v149, %v146
  %v180 = vpack.c.b16 %v150, %v147
  %v181 = vpack.c.b16 %v154, %v151
  %v182 = vpack.c.b16 %v155, %v152
  %v183 = vpack.c.b16 %v156, %v153
  %v184 = vpack.c.b16 %v160, %v157
  %v185 = vpack.c.b16 %v161, %v158
  %v186 = vpack.c.b16 %v162, %v159
  %211 = vmatprep.subr.bf16.mxu0 %v164
  %212 = vmatpush1.bf16.msra.mxu0 %v163
  %213 = vmatprep.subr.bf16.mxu0 %v167
  %214 = vmatpush1.bf16.msra.mxu0 %v166
  %215 = vmatprep.subr.bf16.mxu0 %v170
  %216 = vmatpush1.bf16.msra.mxu0 %v169
  %217 = vmatprep.subr.bf16.mxu0 %v173
  %218 = vmatpush1.bf16.msra.mxu0 %v172
  %219 = vmatprep.subr.bf16.mxu0 %v176
  %220 = vmatpush1.bf16.msra.mxu0 %v175
  %221 = vmatprep.subr.bf16.mxu0 %v179
  %222 = vmatpush1.bf16.msra.mxu0 %v178
  %223 = vmatprep.subr.bf16.mxu0 %v182
  %224 = vmatpush1.bf16.msra.mxu0 %v181
  %225 = vmatprep.subr.bf16.mxu0 %v185
  %226 = vmatpush1.bf16.msra.mxu0 %v184
  %227 = vmatprep.subr.bf16.mxu0 0
  %228 = vmatpush1.bf16.msra.mxu0 0
  %229 = vmatprep.subr.bf16.mxu0 0
  %230 = vmatpush1.bf16.msra.mxu0 0
  %231 = vmatprep.subr.bf16.mxu0 0
  %232 = vmatpush1.bf16.msra.mxu0 0
  %233 = vmatprep.subr.bf16.mxu0 0
  %234 = vmatpush1.bf16.msra.mxu0 0
  %235 = vmatprep.subr.bf16.mxu0 0
  %236 = vmatpush1.bf16.msra.mxu0 0
  %237 = vmatprep.subr.bf16.mxu0 0
  %238 = vmatpush1.bf16.msra.mxu0 0
  %239 = vmatprep.subr.bf16.mxu0 0
  %240 = vmatpush1.bf16.msra.mxu0 0
  %241 = vmatprep.subr.bf16.mxu0 0
  %242 = vmatpush1.bf16.msra.mxu0 0
  %243 = vmatprep.mubr.bf16.mxu0 0
  %244 = vmatmul.mubr.bf16.gmra.mrb[0].mxu0 %v33
  %v245 = vpop.f32.mrb[0].mxu0
  %v246 = vadd.f32 %v71, %v245
  %v247 = vpop.f32.mrb[0].mxu0
  %v248 = vadd.f32 %v75, %v247
  %v249 = vpop.f32.mrb[0].mxu0
  %v250 = vpop.f32.mrb[0].mxu0
  %251 = vdwg.mxu0
  %252 = vmatprep.subr.bf16.mxu0 0
  %253 = vmatpush1.bf16.msra.mxu0 %v165
  %254 = vmatprep.subr.bf16.mxu0 0
  %255 = vmatpush1.bf16.msra.mxu0 %v168
  %256 = vmatprep.subr.bf16.mxu0 0
  %257 = vmatpush1.bf16.msra.mxu0 %v171
  %258 = vmatprep.subr.bf16.mxu0 0
  %259 = vmatpush1.bf16.msra.mxu0 %v174
  %260 = vmatprep.subr.bf16.mxu0 0
  %261 = vmatpush1.bf16.msra.mxu0 %v177
  %262 = vmatprep.subr.bf16.mxu0 0
  %263 = vmatpush1.bf16.msra.mxu0 %v180
  %264 = vmatprep.subr.bf16.mxu0 0
  %265 = vmatpush1.bf16.msra.mxu0 %v183
  %266 = vmatprep.subr.bf16.mxu0 0
  %267 = vmatpush1.bf16.msra.mxu0 %v186
  %268 = vmatprep.subr.bf16.mxu0 0
  %269 = vmatpush1.bf16.msra.mxu0 0
  %270 = vmatprep.subr.bf16.mxu0 0
  %271 = vmatpush1.bf16.msra.mxu0 0
  %272 = vmatprep.subr.bf16.mxu0 0
  %273 = vmatpush1.bf16.msra.mxu0 0
  %274 = vmatprep.subr.bf16.mxu0 0
  %275 = vmatpush1.bf16.msra.mxu0 0
  %276 = vmatprep.subr.bf16.mxu0 0
  %277 = vmatpush1.bf16.msra.mxu0 0
  %278 = vmatprep.subr.bf16.mxu0 0
  %279 = vmatpush1.bf16.msra.mxu0 0
  %280 = vmatprep.subr.bf16.mxu0 0
  %281 = vmatpush1.bf16.msra.mxu0 0
  %282 = vmatprep.subr.bf16.mxu0 0
  %283 = vmatpush1.bf16.msra.mxu0 0
  %284 = vmatprep.mubr.bf16.mxu0 0
  %285 = vmatmul.mubr.bf16.gmra.mrb[0].mxu0 %v33
  %v286 = vpop.f32.mrb[0].mxu0
  %v287 = vadd.f32 %v79, %v286
  %v288 = vpop.f32.mrb[0].mxu0
  %v289 = vpop.f32.mrb[0].mxu0
  %v290 = vpop.f32.mrb[0].mxu0
  %291 = vdwg.mxu0
  %v292 = vpack.c.bf16 %v246, %v246
  %v293 = vpack.c.bf16 %v248, %v248
  %v294 = vpack.c.bf16 %v287, %v287
  %v295 = vld [vmem:[%s3] sm:$0xff]
  %v296 = vld [vmem:[%s3 + $0x8] sm:$0xff]
  %v297 = vld [vmem:[%s3 + $0x10] sm:$0xff]
  %v298 = vld [vmem:[%s3 + $0x18] sm:$0xff]
  %v299 = vld [vmem:[%s3 + $0x20] sm:$0xff]
  %v300 = vld [vmem:[%s3 + $0x28] sm:$0xff]
  %v301 = vld [vmem:[%s3 + $0x30] sm:$0xff]
  %v302 = vld [vmem:[%s3 + $0x38] sm:$0xff]
  %v303 = vld [vmem:[%s3 + $0x40] sm:$0xff]
  %v304 = vld [vmem:[%s3 + $0x48] sm:$0xff]
  %v305 = vld [vmem:[%s3 + $0x50] sm:$0xff]
  %v306 = vld [vmem:[%s3 + $0x58] sm:$0xff]
  %v307 = vld [vmem:[%s3 + $0x60] sm:$0xff]
  %v308 = vld [vmem:[%s3 + $0x68] sm:$0xff]
  %v309 = vld [vmem:[%s3 + $0x70] sm:$0xff]
  %v310 = vld [vmem:[%s3 + $0x78] sm:$0xff]
  %v311 = vld [vmem:[%s3 + $0x80] sm:$0xff]
  %v312 = vld [vmem:[%s3 + $0x88] sm:$0xff]
  %v313 = vld [vmem:[%s3 + $0x90] sm:$0xff]
  %v314 = vld [vmem:[%s3 + $0x98] sm:$0xff]
  %v315 = vld [vmem:[%s3 + $0xa0] sm:$0xff]
  %v316 = vld [vmem:[%s3 + $0xa8] sm:$0xff]
  %v317 = vld [vmem:[%s3 + $0xb0] sm:$0xff]
  %v318 = vld [vmem:[%s3 + $0xb8] sm:$0xff]
  %v319 = vld [vmem:[%s3 + $0xc0] sm:$0xff]
  %v320 = vld [vmem:[%s3 + $0xc8] sm:$0xff]
  %v321 = vld [vmem:[%s3 + $0xd0] sm:$0xff]
  %v322 = vld [vmem:[%s3 + $0xd8] sm:$0xff]
  %v323 = vld [vmem:[%s3 + $0xe0] sm:$0xff]
  %v324 = vld [vmem:[%s3 + $0xe8] sm:$0xff]
  %v325 = vld [vmem:[%s3 + $0xf0] sm:$0xff]
  %v326 = vld [vmem:[%s3 + $0xf8] sm:$0xff]
  %v327 = vld [vmem:[%s3 + $0x100] sm:$0xff]
  %v328 = vld [vmem:[%s3 + $0x108] sm:$0xff]
  %v329 = vld [vmem:[%s3 + $0x110] sm:$0xff]
  %v330 = vld [vmem:[%s3 + $0x118] sm:$0xff]
  %v331 = vld [vmem:[%s3 + $0x120] sm:$0xff]
  %v332 = vld [vmem:[%s3 + $0x128] sm:$0xff]
  %v333 = vld [vmem:[%s3 + $0x130] sm:$0xff]
  %v334 = vld [vmem:[%s3 + $0x138] sm:$0xff]
  %v335 = vld [vmem:[%s3 + $0x140] sm:$0xff]
  %v336 = vld [vmem:[%s3 + $0x148] sm:$0xff]
  %v337 = vld [vmem:[%s3 + $0x150] sm:$0xff]
  %v338 = vld [vmem:[%s3 + $0x158] sm:$0xff]
  %v339 = vld [vmem:[%s3 + $0x160] sm:$0xff]
  %v340 = vld [vmem:[%s3 + $0x168] sm:$0xff]
  %v341 = vld [vmem:[%s3 + $0x170] sm:$0xff]
  %v342 = vld [vmem:[%s3 + $0x178] sm:$0xff]
  %v343 = vld [vmem:[%s4] sm:$0x3]
  %v345 = vlaneseq
  %v346 = vshrl.u32 %v345, 7
  %v347 = vsub.s32 0, %v346
  %v348 = vrot.slane %v343, %v347
  %v349 = vlaneseq
  %v350 = vshrl.u32 %v349, 7
  %v351 = vsub.s32 1, %v350
  %v352 = vrot.slane %v343, %v351
  %v403 = vunpack.c.l.b16 %v295
  %v404 = vunpack.c.h.b16 %v295
  %v405 = vunpack.c.l.b16 %v296
  %v406 = vunpack.c.h.b16 %v296
  %v407 = vunpack.c.l.b16 %v297
  %v408 = vunpack.c.h.b16 %v297
  %v409 = vunpack.c.l.b16 %v298
  %v410 = vunpack.c.h.b16 %v298
  %v411 = vunpack.c.l.b16 %v299
  %v412 = vunpack.c.h.b16 %v299
  %v413 = vunpack.c.l.b16 %v300
  %v414 = vunpack.c.h.b16 %v300
  %v415 = vunpack.c.l.b16 %v301
  %v416 = vunpack.c.h.b16 %v301
  %v417 = vunpack.c.l.b16 %v302
  %v418 = vunpack.c.h.b16 %v302
  %v419 = vunpack.c.l.b16 %v303
  %v420 = vunpack.c.h.b16 %v303
  %v421 = vunpack.c.l.b16 %v304
  %v422 = vunpack.c.h.b16 %v304
  %v423 = vunpack.c.l.b16 %v305
  %v424 = vunpack.c.h.b16 %v305
  %v425 = vunpack.c.l.b16 %v306
  %v426 = vunpack.c.h.b16 %v306
  %v427 = vunpack.c.l.b16 %v307
  %v428 = vunpack.c.h.b16 %v307
  %v429 = vunpack.c.l.b16 %v308
  %v430 = vunpack.c.h.b16 %v308
  %v431 = vunpack.c.l.b16 %v309
  %v432 = vunpack.c.h.b16 %v309
  %v433 = vunpack.c.l.b16 %v310
  %v434 = vunpack.c.h.b16 %v310
  %v435 = vunpack.c.l.b16 %v311
  %v436 = vunpack.c.h.b16 %v311
  %v437 = vunpack.c.l.b16 %v312
  %v438 = vunpack.c.h.b16 %v312
  %v439 = vunpack.c.l.b16 %v313
  %v440 = vunpack.c.h.b16 %v313
  %v441 = vunpack.c.l.b16 %v314
  %v442 = vunpack.c.h.b16 %v314
  %v443 = vunpack.c.l.b16 %v315
  %v444 = vunpack.c.h.b16 %v315
  %v445 = vunpack.c.l.b16 %v316
  %v446 = vunpack.c.h.b16 %v316
  %v447 = vunpack.c.l.b16 %v317
  %v448 = vunpack.c.h.b16 %v317
  %v449 = vunpack.c.l.b16 %v318
  %v450 = vunpack.c.h.b16 %v318
  %v451 = vunpack.c.l.b16 %v319
  %v452 = vunpack.c.h.b16 %v319
  %v453 = vunpack.c.l.b16 %v320
  %v454 = vunpack.c.h.b16 %v320
  %v455 = vunpack.c.l.b16 %v321
  %v456 = vunpack.c.h.b16 %v321
  %v457 = vunpack.c.l.b16 %v322
  %v458 = vunpack.c.h.b16 %v322
  %v459 = vunpack.c.l.b16 %v323
  %v460 = vunpack.c.h.b16 %v323
  %v461 = vunpack.c.l.b16 %v324
  %v462 = vunpack.c.h.b16 %v324
  %v463 = vunpack.c.l.b16 %v325
  %v464 = vunpack.c.h.b16 %v325
  %v465 = vunpack.c.l.b16 %v326
  %v466 = vunpack.c.h.b16 %v326
  %v467 = vunpack.c.l.b16 %v327
  %v468 = vunpack.c.h.b16 %v327
  %v469 = vunpack.c.l.b16 %v328
  %v470 = vunpack.c.h.b16 %v328
  %v471 = vunpack.c.l.b16 %v329
  %v472 = vunpack.c.h.b16 %v329
  %v473 = vunpack.c.l.b16 %v330
  %v474 = vunpack.c.h.b16 %v330
  %v475 = vunpack.c.l.b16 %v331
  %v476 = vunpack.c.h.b16 %v331
  %v477 = vunpack.c.l.b16 %v332
  %v478 = vunpack.c.h.b16 %v332
  %v479 = vunpack.c.l.b16 %v333
  %v480 = vunpack.c.h.b16 %v333
  %v481 = vunpack.c.l.b16 %v334
  %v482 = vunpack.c.h.b16 %v334
  %v483 = vunpack.c.l.b16 %v335
  %v484 = vunpack.c.h.b16 %v335
  %v485 = vunpack.c.l.b16 %v336
  %v486 = vunpack.c.h.b16 %v336
  %v487 = vunpack.c.l.b16 %v337
  %v488 = vunpack.c.h.b16 %v337
  %v489 = vunpack.c.l.b16 %v338
  %v490 = vunpack.c.h.b16 %v338
  %v491 = vunpack.c.l.b16 %v339
  %v492 = vunpack.c.h.b16 %v339
  %v493 = vunpack.c.l.b16 %v340
  %v494 = vunpack.c.h.b16 %v340
  %v495 = vunpack.c.l.b16 %v341
  %v496 = vunpack.c.h.b16 %v341
  %v497 = vunpack.c.l.b16 %v342
  %v498 = vunpack.c.h.b16 %v342
  %v499 = vpack.c.b16 %v405, %v403
  %v500 = vpack.c.b16 %v406, %v404
  %v501 = vpack.c.b16 %v409, %v407
  %v502 = vpack.c.b16 %v410, %v408
  %v503 = vpack.c.b16 %v413, %v411
  %v504 = vpack.c.b16 %v414, %v412
  %v505 = vpack.c.b16 %v417, %v415
  %v506 = vpack.c.b16 %v418, %v416
  %v507 = vpack.c.b16 %v421, %v419
  %v508 = vpack.c.b16 %v422, %v420
  %v509 = vpack.c.b16 %v425, %v423
  %v510 = vpack.c.b16 %v426, %v424
  %v511 = vpack.c.b16 %v429, %v427
  %v512 = vpack.c.b16 %v430, %v428
  %v513 = vpack.c.b16 %v433, %v431
  %v514 = vpack.c.b16 %v434, %v432
  %v515 = vpack.c.b16 %v437, %v435
  %v516 = vpack.c.b16 %v438, %v436
  %v517 = vpack.c.b16 %v441, %v439
  %v518 = vpack.c.b16 %v442, %v440
  %v519 = vpack.c.b16 %v445, %v443
  %v520 = vpack.c.b16 %v446, %v444
  %v521 = vpack.c.b16 %v449, %v447
  %v522 = vpack.c.b16 %v450, %v448
  %v523 = vpack.c.b16 %v453, %v451
  %v524 = vpack.c.b16 %v454, %v452
  %v525 = vpack.c.b16 %v457, %v455
  %v526 = vpack.c.b16 %v458, %v456
  %v527 = vpack.c.b16 %v461, %v459
  %v528 = vpack.c.b16 %v462, %v460
  %v529 = vpack.c.b16 %v465, %v463
  %v530 = vpack.c.b16 %v466, %v464
  %v531 = vpack.c.b16 %v469, %v467
  %v532 = vpack.c.b16 %v470, %v468
  %v533 = vpack.c.b16 %v473, %v471
  %v534 = vpack.c.b16 %v474, %v472
  %v535 = vpack.c.b16 %v477, %v475
  %v536 = vpack.c.b16 %v478, %v476
  %v537 = vpack.c.b16 %v481, %v479
  %v538 = vpack.c.b16 %v482, %v480
  %v539 = vpack.c.b16 %v485, %v483
  %v540 = vpack.c.b16 %v486, %v484
  %v541 = vpack.c.b16 %v489, %v487
  %v542 = vpack.c.b16 %v490, %v488
  %v543 = vpack.c.b16 %v493, %v491
  %v544 = vpack.c.b16 %v494, %v492
  %v545 = vpack.c.b16 %v497, %v495
  %v546 = vpack.c.b16 %v498, %v496
  %595 = vmatprep.subr.bf16.mxu0 %v500
  %596 = vmatpush1.bf16.msra.mxu0 %v499
  %597 = vmatprep.subr.bf16.mxu0 %v502
  %598 = vmatpush1.bf16.msra.mxu0 %v501
  %599 = vmatprep.subr.bf16.mxu0 %v504
  %600 = vmatpush1.bf16.msra.mxu0 %v503
  %601 = vmatprep.subr.bf16.mxu0 %v506
  %602 = vmatpush1.bf16.msra.mxu0 %v505
  %603 = vmatprep.subr.bf16.mxu0 %v508
  %604 = vmatpush1.bf16.msra.mxu0 %v507
  %605 = vmatprep.subr.bf16.mxu0 %v510
  %606 = vmatpush1.bf16.msra.mxu0 %v509
  %607 = vmatprep.subr.bf16.mxu0 %v512
  %608 = vmatpush1.bf16.msra.mxu0 %v511
  %609 = vmatprep.subr.bf16.mxu0 %v514
  %610 = vmatpush1.bf16.msra.mxu0 %v513
  %611 = vmatprep.subr.bf16.mxu0 %v516
  %612 = vmatpush1.bf16.msra.mxu0 %v515
  %613 = vmatprep.subr.bf16.mxu0 %v518
  %614 = vmatpush1.bf16.msra.mxu0 %v517
  %615 = vmatprep.subr.bf16.mxu0 %v520
  %616 = vmatpush1.bf16.msra.mxu0 %v519
  %617 = vmatprep.subr.bf16.mxu0 %v522
  %618 = vmatpush1.bf16.msra.mxu0 %v521
  %619 = vmatprep.subr.bf16.mxu0 %v524
  %620 = vmatpush1.bf16.msra.mxu0 %v523
  %621 = vmatprep.subr.bf16.mxu0 %v526
  %622 = vmatpush1.bf16.msra.mxu0 %v525
  %623 = vmatprep.subr.bf16.mxu0 %v528
  %624 = vmatpush1.bf16.msra.mxu0 %v527
  %625 = vmatprep.subr.bf16.mxu0 %v530
  %626 = vmatpush1.bf16.msra.mxu0 %v529
  %627 = vmatprep.mubr.bf16.mxu0 %v293
  %628 = vmatmul.mubr.bf16.gmra.mrb[0].mxu0 %v292
  %v629 = vpop.f32.mrb[0].mxu0
  %v630 = vadd.f32 %v348, %v629
  %v631 = vpop.f32.mrb[0].mxu0
  %v632 = vadd.f32 %v352, %v631
  %v633 = vpop.f32.mrb[0].mxu0
  %v634 = vpop.f32.mrb[0].mxu0
  %635 = vdwg.mxu0
  %636 = vmatprep.subr.bf16.mxu0 %v532
  %637 = vmatpush1.bf16.msra.mxu0 %v531
  %638 = vmatprep.subr.bf16.mxu0 %v534
  %639 = vmatpush1.bf16.msra.mxu0 %v533
  %640 = vmatprep.subr.bf16.mxu0 %v536
  %641 = vmatpush1.bf16.msra.mxu0 %v535
  %642 = vmatprep.subr.bf16.mxu0 %v538
  %643 = vmatpush1.bf16.msra.mxu0 %v537
  %644 = vmatprep.subr.bf16.mxu0 %v540
  %645 = vmatpush1.bf16.msra.mxu0 %v539
  %646 = vmatprep.subr.bf16.mxu0 %v542
  %647 = vmatpush1.bf16.msra.mxu0 %v541
  %648 = vmatprep.subr.bf16.mxu0 %v544
  %649 = vmatpush1.bf16.msra.mxu0 %v543
  %650 = vmatprep.subr.bf16.mxu0 %v546
  %651 = vmatpush1.bf16.msra.mxu0 %v545
  %652 = vmatprep.subr.bf16.mxu0 0
  %653 = vmatpush1.bf16.msra.mxu0 0
  %654 = vmatprep.subr.bf16.mxu0 0
  %655 = vmatpush1.bf16.msra.mxu0 0
  %656 = vmatprep.subr.bf16.mxu0 0
  %657 = vmatpush1.bf16.msra.mxu0 0
  %658 = vmatprep.subr.bf16.mxu0 0
  %659 = vmatpush1.bf16.msra.mxu0 0
  %660 = vmatprep.subr.bf16.mxu0 0
  %661 = vmatpush1.bf16.msra.mxu0 0
  %662 = vmatprep.subr.bf16.mxu0 0
  %663 = vmatpush1.bf16.msra.mxu0 0
  %664 = vmatprep.subr.bf16.mxu0 0
  %665 = vmatpush1.bf16.msra.mxu0 0
  %666 = vmatprep.subr.bf16.mxu0 0
  %667 = vmatpush1.bf16.msra.mxu0 0
  %668 = vmatprep.mubr.bf16.mxu0 0
  %669 = vmatmul.mubr.bf16.gmra.mrb[0].mxu0 %v294
  %v670 = vpop.f32.mrb[0].mxu0
  %v671 = vadd.f32 %v630, %v670
  %v672 = vpop.f32.mrb[0].mxu0
  %v673 = vadd.f32 %v632, %v672
  %v674 = vpop.f32.mrb[0].mxu0
  %v675 = vpop.f32.mrb[0].mxu0
  %676 = vdwg.mxu0
  %v677 = vsub.f32 0.0, %v671
  %v678 = vsub.f32 0.0, %v673
  %v679 = vmul.f32 %v677, 1.442695
  %v680 = vpow.pop %v679
  %v681 = vmul.f32 %v678, 1.442695
  %v682 = vpow.pop %v681
  %v683 = vadd.f32 %v680, 1.0
  %v684 = vadd.f32 %v682, 1.0
  %v685 = vrcp.pop %v683
  %v686 = vrcp.pop %v684
  %v687 = vpack.c.bf16 %v685, %v685
  %v688 = vpack.c.bf16 %v686, %v686
  %v689 = vld [vmem:[%s5] sm:$0xff]
  %v690 = vld [vmem:[%s5 + $0x8] sm:$0xf]
  %v691 = vld [vmem:[%s5 + $0xc] sm:$0xff]
  %v692 = vld [vmem:[%s5 + $0x14] sm:$0xf]
  %v693 = vld [vmem:[%s5 + $0x18] sm:$0xff]
  %v694 = vld [vmem:[%s5 + $0x20] sm:$0xf]
  %v695 = vld [vmem:[%s5 + $0x24] sm:$0xff]
  %v696 = vld [vmem:[%s5 + $0x2c] sm:$0xf]
  %v697 = vld [vmem:[%s5 + $0x30] sm:$0xff]
  %v698 = vld [vmem:[%s5 + $0x38] sm:$0xf]
  %v699 = vld [vmem:[%s5 + $0x3c] sm:$0xff]
  %v700 = vld [vmem:[%s5 + $0x44] sm:$0xf]
  %v701 = vld [vmem:[%s5 + $0x48] sm:$0xff]
  %v702 = vld [vmem:[%s5 + $0x50] sm:$0xf]
  %v703 = vld [vmem:[%s5 + $0x54] sm:$0xff]
  %v704 = vld [vmem:[%s5 + $0x5c] sm:$0xf]
  %v705 = vld [vmem:[%s5 + $0x60] sm:$0xff]
  %v706 = vld [vmem:[%s5 + $0x68] sm:$0xf]
  %v707 = vld [vmem:[%s5 + $0x6c] sm:$0xff]
  %v708 = vld [vmem:[%s5 + $0x74] sm:$0xf]
  %v709 = vld [vmem:[%s5 + $0x78] sm:$0xff]
  %v710 = vld [vmem:[%s5 + $0x80] sm:$0xf]
  %v711 = vld [vmem:[%s5 + $0x84] sm:$0xff]
  %v712 = vld [vmem:[%s5 + $0x8c] sm:$0xf]
  %v713 = vld [vmem:[%s5 + $0x90] sm:$0xff]
  %v714 = vld [vmem:[%s5 + $0x98] sm:$0xf]
  %v715 = vld [vmem:[%s5 + $0x9c] sm:$0xff]
  %v716 = vld [vmem:[%s5 + $0xa4] sm:$0xf]
  %v717 = vld [vmem:[%s5 + $0xa8] sm:$0xff]
  %v718 = vld [vmem:[%s5 + $0xb0] sm:$0xf]
  %v719 = vld [vmem:[%s5 + $0xb4] sm:$0xff]
  %v720 = vld [vmem:[%s5 + $0xbc] sm:$0xf]
  %v721 = vld [vmem:[%s5 + $0xc0] sm:$0xff]
  %v722 = vld [vmem:[%s5 + $0xc8] sm:$0xf]
  %v723 = vld [vmem:[%s5 + $0xcc] sm:$0xff]
  %v724 = vld [vmem:[%s5 + $0xd4] sm:$0xf]
  %v725 = vld [vmem:[%s5 + $0xd8] sm:$0xff]
  %v726 = vld [vmem:[%s5 + $0xe0] sm:$0xf]
  %v727 = vld [vmem:[%s5 + $0xe4] sm:$0xff]
  %v728 = vld [vmem:[%s5 + $0xec] sm:$0xf]
  %v729 = vld [vmem:[%s5 + $0xf0] sm:$0xff]
  %v730 = vld [vmem:[%s5 + $0xf8] sm:$0xf]
  %v731 = vld [vmem:[%s5 + $0xfc] sm:$0xff]
  %v732 = vld [vmem:[%s5 + $0x104] sm:$0xf]
  %v733 = vld [vmem:[%s5 + $0x108] sm:$0xff]
  %v734 = vld [vmem:[%s5 + $0x110] sm:$0xf]
  %v735 = vld [vmem:[%s5 + $0x114] sm:$0xff]
  %v736 = vld [vmem:[%s5 + $0x11c] sm:$0xf]
  %v737 = vld [vmem:[%s5 + $0x120] sm:$0xff]
  %v738 = vld [vmem:[%s5 + $0x128] sm:$0xf]
  %v739 = vld [vmem:[%s5 + $0x12c] sm:$0xff]
  %v740 = vld [vmem:[%s5 + $0x134] sm:$0xf]
  %v741 = vld [vmem:[%s5 + $0x138] sm:$0xff]
  %v742 = vld [vmem:[%s5 + $0x140] sm:$0xf]
  %v743 = vld [vmem:[%s5 + $0x144] sm:$0xff]
  %v744 = vld [vmem:[%s5 + $0x14c] sm:$0xf]
  %v745 = vld [vmem:[%s5 + $0x150] sm:$0xff]
  %v746 = vld [vmem:[%s5 + $0x158] sm:$0xf]
  %v747 = vld [vmem:[%s5 + $0x15c] sm:$0xff]
  %v748 = vld [vmem:[%s5 + $0x164] sm:$0xf]
  %v749 = vld [vmem:[%s5 + $0x168] sm:$0xff]
  %v750 = vld [vmem:[%s5 + $0x170] sm:$0xf]
  %v751 = vld [vmem:[%s5 + $0x174] sm:$0xff]
  %v752 = vld [vmem:[%s5 + $0x17c] sm:$0xf]
  %v753 = vld [vmem:[%s6] sm:$0x7]
  %v755 = vlaneseq
  %v756 = vshrl.u32 %v755, 7
  %v757 = vsub.s32 0, %v756
  %v758 = vrot.slane %v753, %v757
  %v759 = vlaneseq
  %v760 = vshrl.u32 %v759, 7
  %v761 = vsub.s32 1, %v760
  %v762 = vrot.slane %v753, %v761
  %v763 = vlaneseq
  %v764 = vshrl.u32 %v763, 7
  %v765 = vsub.s32 2, %v764
  %v766 = vrot.slane %v753, %v765
  %v834 = vunpack.c.l.b16 %v689
  %v835 = vunpack.c.h.b16 %v689
  %v836 = vunpack.c.l.b16 %v690
  %v837 = vunpack.c.l.b16 %v691
  %v838 = vunpack.c.h.b16 %v691
  %v839 = vunpack.c.l.b16 %v692
  %v840 = vunpack.c.l.b16 %v693
  %v841 = vunpack.c.h.b16 %v693
  %v842 = vunpack.c.l.b16 %v694
  %v843 = vunpack.c.l.b16 %v695
  %v844 = vunpack.c.h.b16 %v695
  %v845 = vunpack.c.l.b16 %v696
  %v846 = vunpack.c.l.b16 %v697
  %v847 = vunpack.c.h.b16 %v697
  %v848 = vunpack.c.l.b16 %v698
  %v849 = vunpack.c.l.b16 %v699
  %v850 = vunpack.c.h.b16 %v699
  %v851 = vunpack.c.l.b16 %v700
  %v852 = vunpack.c.l.b16 %v701
  %v853 = vunpack.c.h.b16 %v701
  %v854 = vunpack.c.l.b16 %v702
  %v855 = vunpack.c.l.b16 %v703
  %v856 = vunpack.c.h.b16 %v703
  %v857 = vunpack.c.l.b16 %v704
  %v858 = vunpack.c.l.b16 %v705
  %v859 = vunpack.c.h.b16 %v705
  %v860 = vunpack.c.l.b16 %v706
  %v861 = vunpack.c.l.b16 %v707
  %v862 = vunpack.c.h.b16 %v707
  %v863 = vunpack.c.l.b16 %v708
  %v864 = vunpack.c.l.b16 %v709
  %v865 = vunpack.c.h.b16 %v709
  %v866 = vunpack.c.l.b16 %v710
  %v867 = vunpack.c.l.b16 %v711
  %v868 = vunpack.c.h.b16 %v711
  %v869 = vunpack.c.l.b16 %v712
  %v870 = vunpack.c.l.b16 %v713
  %v871 = vunpack.c.h.b16 %v713
  %v872 = vunpack.c.l.b16 %v714
  %v873 = vunpack.c.l.b16 %v715
  %v874 = vunpack.c.h.b16 %v715
  %v875 = vunpack.c.l.b16 %v716
  %v876 = vunpack.c.l.b16 %v717
  %v877 = vunpack.c.h.b16 %v717
  %v878 = vunpack.c.l.b16 %v718
  %v879 = vunpack.c.l.b16 %v719
  %v880 = vunpack.c.h.b16 %v719
  %v881 = vunpack.c.l.b16 %v720
  %v882 = vunpack.c.l.b16 %v721
  %v883 = vunpack.c.h.b16 %v721
  %v884 = vunpack.c.l.b16 %v722
  %v885 = vunpack.c.l.b16 %v723
  %v886 = vunpack.c.h.b16 %v723
  %v887 = vunpack.c.l.b16 %v724
  %v888 = vunpack.c.l.b16 %v725
  %v889 = vunpack.c.h.b16 %v725
  %v890 = vunpack.c.l.b16 %v726
  %v891 = vunpack.c.l.b16 %v727
  %v892 = vunpack.c.h.b16 %v727
  %v893 = vunpack.c.l.b16 %v728
  %v894 = vunpack.c.l.b16 %v729
  %v895 = vunpack.c.h.b16 %v729
  %v896 = vunpack.c.l.b16 %v730
  %v897 = vunpack.c.l.b16 %v731
  %v898 = vunpack.c.h.b16 %v731
  %v899 = vunpack.c.l.b16 %v732
  %v900 = vunpack.c.l.b16 %v733
  %v901 = vunpack.c.h.b16 %v733
  %v902 = vunpack.c.l.b16 %v734
  %v903 = vunpack.c.l.b16 %v735
  %v904 = vunpack.c.h.b16 %v735
  %v905 = vunpack.c.l.b16 %v736
  %v906 = vunpack.c.l.b16 %v737
  %v907 = vunpack.c.h.b16 %v737
  %v908 = vunpack.c.l.b16 %v738
  %v909 = vunpack.c.l.b16 %v739
  %v910 = vunpack.c.h.b16 %v739
  %v911 = vunpack.c.l.b16 %v740
  %v912 = vunpack.c.l.b16 %v741
  %v913 = vunpack.c.h.b16 %v741
  %v914 = vunpack.c.l.b16 %v742
  %v915 = vunpack.c.l.b16 %v743
  %v916 = vunpack.c.h.b16 %v743
  %v917 = vunpack.c.l.b16 %v744
  %v918 = vunpack.c.l.b16 %v745
  %v919 = vunpack.c.h.b16 %v745
  %v920 = vunpack.c.l.b16 %v746
  %v921 = vunpack.c.l.b16 %v747
  %v922 = vunpack.c.h.b16 %v747
  %v923 = vunpack.c.l.b16 %v748
  %v924 = vunpack.c.l.b16 %v749
  %v925 = vunpack.c.h.b16 %v749
  %v926 = vunpack.c.l.b16 %v750
  %v927 = vunpack.c.l.b16 %v751
  %v928 = vunpack.c.h.b16 %v751
  %v929 = vunpack.c.l.b16 %v752
  %v930 = vpack.c.b16 %v837, %v834
  %v931 = vpack.c.b16 %v838, %v835
  %v932 = vpack.c.b16 %v839, %v836
  %v933 = vpack.c.b16 %v843, %v840
  %v934 = vpack.c.b16 %v844, %v841
  %v935 = vpack.c.b16 %v845, %v842
  %v936 = vpack.c.b16 %v849, %v846
  %v937 = vpack.c.b16 %v850, %v847
  %v938 = vpack.c.b16 %v851, %v848
  %v939 = vpack.c.b16 %v855, %v852
  %v940 = vpack.c.b16 %v856, %v853
  %v941 = vpack.c.b16 %v857, %v854
  %v942 = vpack.c.b16 %v861, %v858
  %v943 = vpack.c.b16 %v862, %v859
  %v944 = vpack.c.b16 %v863, %v860
  %v945 = vpack.c.b16 %v867, %v864
  %v946 = vpack.c.b16 %v868, %v865
  %v947 = vpack.c.b16 %v869, %v866
  %v948 = vpack.c.b16 %v873, %v870
  %v949 = vpack.c.b16 %v874, %v871
  %v950 = vpack.c.b16 %v875, %v872
  %v951 = vpack.c.b16 %v879, %v876
  %v952 = vpack.c.b16 %v880, %v877
  %v953 = vpack.c.b16 %v881, %v878
  %v954 = vpack.c.b16 %v885, %v882
  %v955 = vpack.c.b16 %v886, %v883
  %v956 = vpack.c.b16 %v887, %v884
  %v957 = vpack.c.b16 %v891, %v888
  %v958 = vpack.c.b16 %v892, %v889
  %v959 = vpack.c.b16 %v893, %v890
  %v960 = vpack.c.b16 %v897, %v894
  %v961 = vpack.c.b16 %v898, %v895
  %v962 = vpack.c.b16 %v899, %v896
  %v963 = vpack.c.b16 %v903, %v900
  %v964 = vpack.c.b16 %v904, %v901
  %v965 = vpack.c.b16 %v905, %v902
  %v966 = vpack.c.b16 %v909, %v906
  %v967 = vpack.c.b16 %v910, %v907
  %v968 = vpack.c.b16 %v911, %v908
  %v969 = vpack.c.b16 %v915, %v912
  %v970 = vpack.c.b16 %v916, %v913
  %v971 = vpack.c.b16 %v917, %v914
  %v972 = vpack.c.b16 %v921, %v918
  %v973 = vpack.c.b16 %v922, %v919
  %v974 = vpack.c.b16 %v923, %v920
  %v975 = vpack.c.b16 %v927, %v924
  %v976 = vpack.c.b16 %v928, %v925
  %v977 = vpack.c.b16 %v929, %v926
  %1026 = vmatprep.subr.bf16.mxu0 %v931
  %1027 = vmatpush1.bf16.msra.mxu0 %v930
  %1028 = vmatprep.subr.bf16.mxu0 %v934
  %1029 = vmatpush1.bf16.msra.mxu0 %v933
  %1030 = vmatprep.subr.bf16.mxu0 %v937
  %1031 = vmatpush1.bf16.msra.mxu0 %v936
  %1032 = vmatprep.subr.bf16.mxu0 %v940
  %1033 = vmatpush1.bf16.msra.mxu0 %v939
  %1034 = vmatprep.subr.bf16.mxu0 %v943
  %1035 = vmatpush1.bf16.msra.mxu0 %v942
  %1036 = vmatprep.subr.bf16.mxu0 %v946
  %1037 = vmatpush1.bf16.msra.mxu0 %v945
  %1038 = vmatprep.subr.bf16.mxu0 %v949
  %1039 = vmatpush1.bf16.msra.mxu0 %v948
  %1040 = vmatprep.subr.bf16.mxu0 %v952
  %1041 = vmatpush1.bf16.msra.mxu0 %v951
  %1042 = vmatprep.subr.bf16.mxu0 %v955
  %1043 = vmatpush1.bf16.msra.mxu0 %v954
  %1044 = vmatprep.subr.bf16.mxu0 %v958
  %1045 = vmatpush1.bf16.msra.mxu0 %v957
  %1046 = vmatprep.subr.bf16.mxu0 %v961
  %1047 = vmatpush1.bf16.msra.mxu0 %v960
  %1048 = vmatprep.subr.bf16.mxu0 %v964
  %1049 = vmatpush1.bf16.msra.mxu0 %v963
  %1050 = vmatprep.subr.bf16.mxu0 %v967
  %1051 = vmatpush1.bf16.msra.mxu0 %v966
  %1052 = vmatprep.subr.bf16.mxu0 %v970
  %1053 = vmatpush1.bf16.msra.mxu0 %v969
  %1054 = vmatprep.subr.bf16.mxu0 %v973
  %1055 = vmatpush1.bf16.msra.mxu0 %v972
  %1056 = vmatprep.subr.bf16.mxu0 %v976
  %1057 = vmatpush1.bf16.msra.mxu0 %v975
  %1058 = vmatprep.mubr.bf16.mxu0 %v688
  %1059 = vmatmul.mubr.bf16.gmra.mrb[0].mxu0 %v687
  %v1060 = vpop.f32.mrb[0].mxu0
  %v1061 = vadd.f32 %v758, %v1060
  %v1062 = vpop.f32.mrb[0].mxu0
  %v1063 = vadd.f32 %v762, %v1062
  %v1064 = vpop.f32.mrb[0].mxu0
  %v1065 = vpop.f32.mrb[0].mxu0
  %1066 = vdwg.mxu0
  %1067 = vmatprep.subr.bf16.mxu0 0
  %1068 = vmatpush1.bf16.msra.mxu0 %v932
  %1069 = vmatprep.subr.bf16.mxu0 0
  %1070 = vmatpush1.bf16.msra.mxu0 %v935
  %1071 = vmatprep.subr.bf16.mxu0 0
  %1072 = vmatpush1.bf16.msra.mxu0 %v938
  %1073 = vmatprep.subr.bf16.mxu0 0
  %1074 = vmatpush1.bf16.msra.mxu0 %v941
  %1075 = vmatprep.subr.bf16.mxu0 0
  %1076 = vmatpush1.bf16.msra.mxu0 %v944
  %1077 = vmatprep.subr.bf16.mxu0 0
  %1078 = vmatpush1.bf16.msra.mxu0 %v947
  %1079 = vmatprep.subr.bf16.mxu0 0
  %1080 = vmatpush1.bf16.msra.mxu0 %v950
  %1081 = vmatprep.subr.bf16.mxu0 0
  %1082 = vmatpush1.bf16.msra.mxu0 %v953
  %1083 = vmatprep.subr.bf16.mxu0 0
  %1084 = vmatpush1.bf16.msra.mxu0 %v956
  %1085 = vmatprep.subr.bf16.mxu0 0
  %1086 = vmatpush1.bf16.msra.mxu0 %v959
  %1087 = vmatprep.subr.bf16.mxu0 0
  %1088 = vmatpush1.bf16.msra.mxu0 %v962
  %1089 = vmatprep.subr.bf16.mxu0 0
  %1090 = vmatpush1.bf16.msra.mxu0 %v965
  %1091 = vmatprep.subr.bf16.mxu0 0
  %1092 = vmatpush1.bf16.msra.mxu0 %v968
  %1093 = vmatprep.subr.bf16.mxu0 0
  %1094 = vmatpush1.bf16.msra.mxu0 %v971
  %1095 = vmatprep.subr.bf16.mxu0 0
  %1096 = vmatpush1.bf16.msra.mxu0 %v974
  %1097 = vmatprep.subr.bf16.mxu0 0
  %1098 = vmatpush1.bf16.msra.mxu0 %v977
  %1099 = vmatprep.mubr.bf16.mxu0 %v688
  %1100 = vmatmul.mubr.bf16.gmra.mrb[0].mxu0 %v687
  %v1101 = vpop.f32.mrb[0].mxu0
  %v1102 = vadd.f32 %v766, %v1101
  %v1103 = vpop.f32.mrb[0].mxu0
  %v1104 = vpop.f32.mrb[0].mxu0
  %v1105 = vpop.f32.mrb[0].mxu0
  %1106 = vdwg.mxu0
  %v1107 = vmax.f32 %v1061, 0.0
  %v1108 = vmax.f32 %v1063, 0.0
  %v1109 = vmax.f32 %v1102, 0.0
  %v1110 = vpack.c.bf16 %v1107, %v1107
  %v1111 = vpack.c.bf16 %v1108, %v1108
  %v1112 = vpack.c.bf16 %v1109, %v1109
  %v1113 = vld [vmem:[%s7] sm:$0xf]
  %v1114 = vld [vmem:[%s7 + $0x4] sm:$0xf]
  %v1115 = vld [vmem:[%s7 + $0x8] sm:$0xf]
  %v1116 = vld [vmem:[%s7 + $0xc] sm:$0xf]
  %v1117 = vld [vmem:[%s7 + $0x10] sm:$0xf]
  %v1118 = vld [vmem:[%s7 + $0x14] sm:$0xf]
  %v1119 = vld [vmem:[%s7 + $0x18] sm:$0xf]
  %v1120 = vld [vmem:[%s7 + $0x1c] sm:$0xf]
  %v1121 = vld [vmem:[%s7 + $0x20] sm:$0xf]
  %v1122 = vld [vmem:[%s7 + $0x24] sm:$0xf]
  %v1123 = vld [vmem:[%s7 + $0x28] sm:$0xf]
  %v1124 = vld [vmem:[%s7 + $0x2c] sm:$0xf]
  %v1125 = vld [vmem:[%s7 + $0x30] sm:$0xf]
  %v1126 = vld [vmem:[%s7 + $0x34] sm:$0xf]
  %v1127 = vld [vmem:[%s7 + $0x38] sm:$0xf]
  %v1128 = vld [vmem:[%s7 + $0x3c] sm:$0xf]
  %v1129 = vld [vmem:[%s7 + $0x40] sm:$0xf]
  %v1130 = vld [vmem:[%s7 + $0x44] sm:$0xf]
  %v1131 = vld [vmem:[%s7 + $0x48] sm:$0xf]
  %v1132 = vld [vmem:[%s7 + $0x4c] sm:$0xf]
  %v1133 = vld [vmem:[%s7 + $0x50] sm:$0xf]
  %v1134 = vld [vmem:[%s7 + $0x54] sm:$0xf]
  %v1135 = vld [vmem:[%s7 + $0x58] sm:$0xf]
  %v1136 = vld [vmem:[%s7 + $0x5c] sm:$0xf]
  %v1137 = vld [vmem:[%s7 + $0x60] sm:$0xf]
  %v1138 = vld [vmem:[%s7 + $0x64] sm:$0xf]
  %v1139 = vld [vmem:[%s7 + $0x68] sm:$0xf]
  %v1140 = vld [vmem:[%s7 + $0x6c] sm:$0xf]
  %v1141 = vld [vmem:[%s7 + $0x70] sm:$0xf]
  %v1142 = vld [vmem:[%s7 + $0x74] sm:$0xf]
  %v1143 = vld [vmem:[%s7 + $0x78] sm:$0xf]
  %v1144 = vld [vmem:[%s7 + $0x7c] sm:$0xf]
  %v1145 = vld [vmem:[%s7 + $0x80] sm:$0xf]
  %v1146 = vld [vmem:[%s7 + $0x84] sm:$0xf]
  %v1147 = vld [vmem:[%s7 + $0x88] sm:$0xf]
  %v1148 = vld [vmem:[%s7 + $0x8c] sm:$0xf]
  %v1149 = vld [vmem:[%s7 + $0x90] sm:$0xf]
  %v1150 = vld [vmem:[%s7 + $0x94] sm:$0xf]
  %v1151 = vld [vmem:[%s7 + $0x98] sm:$0xf]
  %v1152 = vld [vmem:[%s7 + $0x9c] sm:$0xf]
  %v1153 = vld [vmem:[%s7 + $0xa0] sm:$0xf]
  %v1154 = vld [vmem:[%s7 + $0xa4] sm:$0xf]
  %v1155 = vld [vmem:[%s7 + $0xa8] sm:$0xf]
  %v1156 = vld [vmem:[%s7 + $0xac] sm:$0xf]
  %v1157 = vld [vmem:[%s7 + $0xb0] sm:$0xf]
  %v1158 = vld [vmem:[%s7 + $0xb4] sm:$0xf]
  %v1159 = vld [vmem:[%s7 + $0xb8] sm:$0xf]
  %v1160 = vld [vmem:[%s7 + $0xbc] sm:$0xf]
  %v1161 = vld [vmem:[%s8] sm:$0x1]
  %v1163 = vlaneseq
  %v1164 = vshrl.u32 %v1163, 7
  %v1165 = vsub.s32 0, %v1164
  %v1166 = vrot.slane %v1161, %v1165
  %v1216 = vunpack.c.l.b16 %v1113
  %v1217 = vunpack.c.l.b16 %v1114
  %v1218 = vunpack.c.l.b16 %v1115
  %v1219 = vunpack.c.l.b16 %v1116
  %v1220 = vunpack.c.l.b16 %v1117
  %v1221 = vunpack.c.l.b16 %v1118
  %v1222 = vunpack.c.l.b16 %v1119
  %v1223 = vunpack.c.l.b16 %v1120
  %v1224 = vunpack.c.l.b16 %v1121
  %v1225 = vunpack.c.l.b16 %v1122
  %v1226 = vunpack.c.l.b16 %v1123
  %v1227 = vunpack.c.l.b16 %v1124
  %v1228 = vunpack.c.l.b16 %v1125
  %v1229 = vunpack.c.l.b16 %v1126
  %v1230 = vunpack.c.l.b16 %v1127
  %v1231 = vunpack.c.l.b16 %v1128
  %v1232 = vunpack.c.l.b16 %v1129
  %v1233 = vunpack.c.l.b16 %v1130
  %v1234 = vunpack.c.l.b16 %v1131
  %v1235 = vunpack.c.l.b16 %v1132
  %v1236 = vunpack.c.l.b16 %v1133
  %v1237 = vunpack.c.l.b16 %v1134
  %v1238 = vunpack.c.l.b16 %v1135
  %v1239 = vunpack.c.l.b16 %v1136
  %v1240 = vunpack.c.l.b16 %v1137
  %v1241 = vunpack.c.l.b16 %v1138
  %v1242 = vunpack.c.l.b16 %v1139
  %v1243 = vunpack.c.l.b16 %v1140
  %v1244 = vunpack.c.l.b16 %v1141
  %v1245 = vunpack.c.l.b16 %v1142
  %v1246 = vunpack.c.l.b16 %v1143
  %v1247 = vunpack.c.l.b16 %v1144
  %v1248 = vunpack.c.l.b16 %v1145
  %v1249 = vunpack.c.l.b16 %v1146
  %v1250 = vunpack.c.l.b16 %v1147
  %v1251 = vunpack.c.l.b16 %v1148
  %v1252 = vunpack.c.l.b16 %v1149
  %v1253 = vunpack.c.l.b16 %v1150
  %v1254 = vunpack.c.l.b16 %v1151
  %v1255 = vunpack.c.l.b16 %v1152
  %v1256 = vunpack.c.l.b16 %v1153
  %v1257 = vunpack.c.l.b16 %v1154
  %v1258 = vunpack.c.l.b16 %v1155
  %v1259 = vunpack.c.l.b16 %v1156
  %v1260 = vunpack.c.l.b16 %v1157
  %v1261 = vunpack.c.l.b16 %v1158
  %v1262 = vunpack.c.l.b16 %v1159
  %v1263 = vunpack.c.l.b16 %v1160
  %v1264 = vpack.c.b16 %v1217, %v1216
  %v1265 = vpack.c.b16 %v1219, %v1218
  %v1266 = vpack.c.b16 %v1221, %v1220
  %v1267 = vpack.c.b16 %v1223, %v1222
  %v1268 = vpack.c.b16 %v1225, %v1224
  %v1269 = vpack.c.b16 %v1227, %v1226
  %v1270 = vpack.c.b16 %v1229, %v1228
  %v1271 = vpack.c.b16 %v1231, %v1230
  %v1272 = vpack.c.b16 %v1233, %v1232
  %v1273 = vpack.c.b16 %v1235, %v1234
  %v1274 = vpack.c.b16 %v1237, %v1236
  %v1275 = vpack.c.b16 %v1239, %v1238
  %v1276 = vpack.c.b16 %v1241, %v1240
  %v1277 = vpack.c.b16 %v1243, %v1242
  %v1278 = vpack.c.b16 %v1245, %v1244
  %v1279 = vpack.c.b16 %v1247, %v1246
  %v1280 = vpack.c.b16 %v1249, %v1248
  %v1281 = vpack.c.b16 %v1251, %v1250
  %v1282 = vpack.c.b16 %v1253, %v1252
  %v1283 = vpack.c.b16 %v1255, %v1254
  %v1284 = vpack.c.b16 %v1257, %v1256
  %v1285 = vpack.c.b16 %v1259, %v1258
  %v1286 = vpack.c.b16 %v1261, %v1260
  %v1287 = vpack.c.b16 %v1263, %v1262
  %1312 = vmatprep.subr.bf16.mxu0 0
  %1313 = vmatpush1.bf16.msra.mxu0 %v1264
  %1314 = vmatprep.subr.bf16.mxu0 0
  %1315 = vmatpush1.bf16.msra.mxu0 %v1265
  %1316 = vmatprep.subr.bf16.mxu0 0
  %1317 = vmatpush1.bf16.msra.mxu0 %v1266
  %1318 = vmatprep.subr.bf16.mxu0 0
  %1319 = vmatpush1.bf16.msra.mxu0 %v1267
  %1320 = vmatprep.subr.bf16.mxu0 0
  %1321 = vmatpush1.bf16.msra.mxu0 %v1268
  %1322 = vmatprep.subr.bf16.mxu0 0
  %1323 = vmatpush1.bf16.msra.mxu0 %v1269
  %1324 = vmatprep.subr.bf16.mxu0 0
  %1325 = vmatpush1.bf16.msra.mxu0 %v1270
  %1326 = vmatprep.subr.bf16.mxu0 0
  %1327 = vmatpush1.bf16.msra.mxu0 %v1271
  %1328 = vmatprep.subr.bf16.mxu0 0
  %1329 = vmatpush1.bf16.msra.mxu0 %v1272
  %1330 = vmatprep.subr.bf16.mxu0 0
  %1331 = vmatpush1.bf16.msra.mxu0 %v1273
  %1332 = vmatprep.subr.bf16.mxu0 0
  %1333 = vmatpush1.bf16.msra.mxu0 %v1274
  %1334 = vmatprep.subr.bf16.mxu0 0
  %1335 = vmatpush1.bf16.msra.mxu0 %v1275
  %1336 = vmatprep.subr.bf16.mxu0 0
  %1337 = vmatpush1.bf16.msra.mxu0 %v1276
  %1338 = vmatprep.subr.bf16.mxu0 0
  %1339 = vmatpush1.bf16.msra.mxu0 %v1277
  %1340 = vmatprep.subr.bf16.mxu0 0
  %1341 = vmatpush1.bf16.msra.mxu0 %v1278
  %1342 = vmatprep.subr.bf16.mxu0 0
  %1343 = vmatpush1.bf16.msra.mxu0 %v1279
  %1344 = vmatprep.mubr.bf16.mxu0 %v1111
  %1345 = vmatmul.mubr.bf16.gmra.mrb[0].mxu0 %v1110
  %v1346 = vpop.f32.mrb[0].mxu0
  %v1347 = vadd.f32 %v1166, %v1346
  %v1348 = vpop.f32.mrb[0].mxu0
  %v1349 = vpop.f32.mrb[0].mxu0
  %v1350 = vpop.f32.mrb[0].mxu0
  %1351 = vdwg.mxu0
  %1352 = vmatprep.subr.bf16.mxu0 0
  %1353 = vmatpush1.bf16.msra.mxu0 %v1280
  %1354 = vmatprep.subr.bf16.mxu0 0
  %1355 = vmatpush1.bf16.msra.mxu0 %v1281
  %1356 = vmatprep.subr.bf16.mxu0 0
  %1357 = vmatpush1.bf16.msra.mxu0 %v1282
  %1358 = vmatprep.subr.bf16.mxu0 0
  %1359 = vmatpush1.bf16.msra.mxu0 %v1283
  %1360 = vmatprep.subr.bf16.mxu0 0
  %1361 = vmatpush1.bf16.msra.mxu0 %v1284
  %1362 = vmatprep.subr.bf16.mxu0 0
  %1363 = vmatpush1.bf16.msra.mxu0 %v1285
  %1364 = vmatprep.subr.bf16.mxu0 0
  %1365 = vmatpush1.bf16.msra.mxu0 %v1286
  %1366 = vmatprep.subr.bf16.mxu0 0
  %1367 = vmatpush1.bf16.msra.mxu0 %v1287
  %1368 = vmatprep.subr.bf16.mxu0 0
  %1369 = vmatpush1.bf16.msra.mxu0 0
  %1370 = vmatprep.subr.bf16.mxu0 0
  %1371 = vmatpush1.bf16.msra.mxu0 0
  %1372 = vmatprep.subr.bf16.mxu0 0
  %1373 = vmatpush1.bf16.msra.mxu0 0
  %1374 = vmatprep.subr.bf16.mxu0 0
  %1375 = vmatpush1.bf16.msra.mxu0 0
  %1376 = vmatprep.subr.bf16.mxu0 0
  %1377 = vmatpush1.bf16.msra.mxu0 0
  %1378 = vmatprep.subr.bf16.mxu0 0
  %1379 = vmatpush1.bf16.msra.mxu0 0
  %1380 = vmatprep.subr.bf16.mxu0 0
  %1381 = vmatpush1.bf16.msra.mxu0 0
  %1382 = vmatprep.subr.bf16.mxu0 0
  %1383 = vmatpush1.bf16.msra.mxu0 0
  %1384 = vmatprep.mubr.bf16.mxu0 0
  %1385 = vmatmul.mubr.bf16.gmra.mrb[0].mxu0 %v1112
  %v1386 = vpop.f32.mrb[0].mxu0
  %v1387 = vadd.f32 %v1347, %v1386
  %v1388 = vpop.f32.mrb[0].mxu0
  %v1389 = vpop.f32.mrb[0].mxu0
  %v1390 = vpop.f32.mrb[0].mxu0
  %1391 = vdwg.mxu0
  %1392 = vst [vmem:[%s9] sm:$0xff] %v1387
  // Predicated region
  $region38: #{mlp_forward.1} parent=0 // pred_check
    _
  $region39: #{mlp_forward.1} parent=0 // pred_check_branch
    %1394 = sbr.rel (0) target = $region41
  $region40: #{mlp_forward.1} parent=0 // pred_region
    _
  $region41: #{mlp_forward.1} parent=0 // pred_fallthru
    _
  // Predicated region
  $region42: #{mlp_forward.1} parent=0 // pred_check
    _
  $region43: #{mlp_forward.1} parent=0 // pred_check_branch
    %1396 = sbr.rel (0) target = $region45
  $region44: #{mlp_forward.1} parent=0 // pred_region
    _
  $region45: #{mlp_forward.1} parent=0 // pred_fallthru
    _

</llo_original>
